<compile_context>
chip_gen: v7x
topology: tpu7x:2x2x1
jax: 0.10.0
libtpu: 0.0.40
codegen_flags: <defaults>
</compile_context>

<pallas_src>
import math

import jax
import jax.numpy as jnp
from jax import lax
from jax.experimental import pallas as pl
from jax.experimental.pallas import tpu as pltpu

_SQRT_HALF = 0.7071067811865476
_TANH_C = math.sqrt(2.0 / math.pi)

# Flipped to False (once, process-wide) if pl.Buffered(1) is not supported.
_SINGLE_BUFFER_WEIGHTS_OK = True


def _cdiv(a, b):
    return -(-a // b)


def _round_up(x, m):
    return _cdiv(x, m) * m


def _largest_divisor_tile(total, target):
    """Largest multiple of 128 that divides `total` (a multiple of 128) and is
    <= max(target, 128)."""
    t = max(128, min(target, total))
    t = (t // 128) * 128
    while total % t != 0:
        t -= 128
    return t


def _vmem_budget_bytes():
    cap = 64 << 20  # conservative fallback
    try:
        cap = int(pltpu.get_tpu_info().vmem_capacity_bytes)
    except Exception:
        pass
    try:
        kind = jax.devices()[0].device_kind.lower()
    except Exception:
        kind = ""
    # VMEM is per-TensorCore; v7x has 2 TCs/chip, so never budget > 64 MiB there.
    if "v7" in kind or "7x" in kind:
        cap = min(cap, 64 << 20)
    return (cap * 3) // 4  # headroom for compiler-internal scratch


def _gelu(h, approximate):
    if approximate:
        # tanh form -> EUP; slightly different numerics than erf (opt-in, v5e).
        return 0.5 * h * (1.0 + jnp.tanh(_TANH_C * (h + 0.044715 * h * h * h)))
    # exact erf-based GELU == nn.GELU(approximate='none'); lowers to a VPU
    # polynomial (hidden behind the MXU for realistic channel sizes).
    return 0.5 * h * (1.0 + lax.erf(h * _SQRT_HALF))


# ----------------------------- kernels ---------------------------------------

def _make_single_k_kernel(compute_dtype, gelu_approximate):
    # Weights fully VMEM-resident (constant-index blocks): no accumulator, no
    # zero-init, fc2 result goes straight to o_ref.
    def kernel(x_ref, w1_ref, b1_ref, w2_ref, b2_ref, o_ref):
        xv = x_ref[...].astype(compute_dtype)           # in-kernel cast (no HBM pass)
        h = jnp.dot(xv, w1_ref[...], preferred_element_type=jnp.float32)
        h = _gelu(h + b1_ref[...], gelu_approximate)    # f32 bias + GELU
        y = jnp.dot(h.astype(compute_dtype), w2_ref[...],
                    preferred_element_type=jnp.float32)
        o_ref[...] = (y + b2_ref[...]).astype(o_ref.dtype)
    return kernel


def _make_multi_k_kernel(compute_dtype, gelu_approximate):
    # Fallback when the weights do not fit VMEM: hidden axis tiled (inner,
    # "arbitrary"); fc2 partials accumulated in an f32 VMEM scratch.
    def kernel(x_ref, w1_ref, b1_ref, w2_ref, b2_ref, o_ref, acc_ref):
        k = pl.program_id(1)

        @pl.when(k == 0)
        def _init():
            acc_ref[...] = jnp.zeros_like(acc_ref)

        xv = x_ref[...].astype(compute_dtype)
        h = jnp.dot(xv, w1_ref[...], preferred_element_type=jnp.float32)
        h = _gelu(h + b1_ref[...], gelu_approximate)
        acc_ref[...] += jnp.dot(h.astype(compute_dtype), w2_ref[...],
                                preferred_element_type=jnp.float32)

        @pl.when(k == pl.num_programs(1) - 1)
        def _finalize():
            o_ref[...] = (acc_ref[...] + b2_ref[...]).astype(o_ref.dtype)
    return kernel


# ------------------------- VMEM footprint estimates --------------------------

def _est_single_k(tm, cin, chid, cout, xb, cb, ob):
    # weights counted double-buffered (conservative: covers the fallback where
    # pl.Buffered(1) is unavailable); biases pad to 8 sublanes in VMEM.
    weights = 2 * (cin * chid + chid * cout) * cb + 2 * 8 * (chid + cout) * 4
    tiles = 2 * tm * cin * xb + 2 * tm * cout * ob
    interm = tm * cin * cb + tm * chid * (4 + cb) + tm * cout * 4  # x cast, h(+cast), y
    return weights + tiles + interm


def _est_multi_k(tm, tk, cin, cout, xb, cb, ob):
    weights = 2 * (cin * tk + tk * cout) * cb + 2 * 8 * (tk + cout) * 4
    tiles = 2 * tm * cin * xb + 2 * tm * cout * ob
    interm = tm * cin * cb + tm * tk * (4 + cb) + tm * cout * 4
    acc = tm * cout * 4
    return weights + tiles + interm + acc


# --------------------------------- wrapper -----------------------------------

def mlp_pallas(x, w1, b1, w2, b2, *, tm=None, tk=None,
               compute_dtype=None, gelu_approximate=False):
    """MLP forward: GELU(x @ w1 + b1) @ w2 + b2.   (dropout p=0 == identity)

    x : (..., Cin)
    w1: (Cin, Chid)   b1: (Chid,)   (pre-transposed vs PyTorch's (out, in))
    w2: (Chid, Cout)  b2: (Cout,)

    compute_dtype: MXU operand dtype (f32 accumulation always).  Default is
    x.dtype (bit-exact for f32 inputs).  Pass jnp.bfloat16 for f32 inputs to
    get bf16 MXU throughput on v5e/v6e/v7x when the accuracy loss is OK.
    """
    global _SINGLE_BUFFER_WEIGHTS_OK

    orig_shape = x.shape
    cin = orig_shape[-1]
    chid, cout = w1.shape[1], w2.shape[1]
    assert w1.shape[0] == cin and w2.shape[0] == chid
    assert b1.shape == (chid,) and b2.shape == (cout,)

    out_dtype = x.dtype
    compute_dtype = (jnp.dtype(compute_dtype) if compute_dtype is not None
                     else jnp.dtype(x.dtype))

    x2d = x.reshape(-1, cin)
    m = x2d.shape[0]

    xb = jnp.dtype(x.dtype).itemsize
    cb = compute_dtype.itemsize
    ob = jnp.dtype(out_dtype).itemsize

    budget = _vmem_budget_bytes()

    # ---- token tile (multiple of 16 so bf16 (16,128) packing is legal) ------
    tm_ = 512 if tm is None else int(tm)
    tm_ = max(16, min(_round_up(tm_, 16), _round_up(m, 16)))
    if m > 256 and _cdiv(m, tm_) < 2:
        tm_ = _round_up(_cdiv(m, 2), 16)   # >=2 M tiles keeps both v7x TCs busy

    # ---- single-K (weights VMEM-resident) unless they truly cannot fit ------
    use_single = (tk is None) or (int(tk) >= chid)
    if use_single:
        # shrink tm first: keeping the weights resident beats a big token tile
        while _est_single_k(tm_, cin, chid, cout, xb, cb, ob) > budget and tm_ > 64:
            tm_ = max(64, _round_up(tm_ // 2, 16))
        use_single = _est_single_k(tm_, cin, chid, cout, xb, cb, ob) <= budget

    # Weights / biases: cast once (weight-sized, cheap).  x is cast inside the
    # kernel, avoiding an extra wrapper-side HBM pass over the activations.
    w1c = w1.astype(compute_dtype)
    w2c = w2.astype(compute_dtype)
    b1c = b1.astype(jnp.float32).reshape(1, chid)
    b2c = b2.astype(jnp.float32).reshape(1, cout)

    cost = pl.CostEstimate(
        flops=2 * m * chid * (cin + cout),
        transcendentals=m * chid,
        bytes_accessed=(x2d.size * xb + (w1c.size + w2c.size) * cb
                        + (b1c.size + b2c.size) * 4 + m * cout * ob),
    )

    if use_single:
        kernel = _make_single_k_kernel(compute_dtype, gelu_approximate)
        grid = (_cdiv(m, tm_),)

        def call(single_buffer_weights):
            wkw = ({"pipeline_mode": pl.Buffered(1)}
                   if single_buffer_weights else {})
            return pl.pallas_call(
                kernel,
                out_shape=jax.ShapeDtypeStruct((m, cout), out_dtype),
                grid_spec=pltpu.PrefetchScalarGridSpec(
                    num_scalar_prefetch=0,
                    grid=grid,
                    in_specs=[
                        pl.BlockSpec((tm_, cin), lambda i: (i, 0)),
                        pl.BlockSpec((cin, chid), lambda i: (0, 0), **wkw),
                        pl.BlockSpec((1, chid), lambda i: (0, 0), **wkw),
                        pl.BlockSpec((chid, cout), lambda i: (0, 0), **wkw),
                        pl.BlockSpec((1, cout), lambda i: (0, 0), **wkw),
                    ],
                    out_specs=pl.BlockSpec((tm_, cout), lambda i: (i, 0)),
                ),
                compiler_params=pltpu.CompilerParams(
                    dimension_semantics=("parallel",),
                    vmem_limit_bytes=int(budget),
                ),
                cost_estimate=cost,
            )(x2d, w1c, b1c, w2c, b2c)

        if _SINGLE_BUFFER_WEIGHTS_OK:
            try:
                out2d = call(True)
            except Exception:
                # pl.Buffered(1) unsupported on this JAX/Mosaic build -> default
                # buffering (weights are still only fetched once: constant index).
                _SINGLE_BUFFER_WEIGHTS_OK = False
                out2d = call(False)
        else:
            out2d = call(False)
    else:
        # ---- hidden-axis tiling fallback (weights too large for VMEM) -------
        chid_p = _round_up(chid, 128)
        tk_ = _largest_divisor_tile(chid_p, int(tk) if tk is not None else 512)
        while (_est_multi_k(tm_, tk_, cin, cout, xb, cb, ob) > budget
               and (tm_ > 64 or tk_ > 128)):
            if tm_ > 64:                       # shrink tm before tk (feedback)
                tm_ = max(64, _round_up(tm_ // 2, 16))
            else:
                tk_ = _largest_divisor_tile(chid_p, tk_ - 128)

        # Zero-pad ONLY the (small) weights along the hidden dim; exact because
        # GELU(0 + 0) = 0 and the matching w2 rows are zero.
        w1p = jnp.pad(w1c, ((0, 0), (0, chid_p - chid)))
        b1p = jnp.pad(b1c, ((0, 0), (0, chid_p - chid)))
        w2p = jnp.pad(w2c, ((0, chid_p - chid), (0, 0)))

        kernel = _make_multi_k_kernel(compute_dtype, gelu_approximate)
        grid = (_cdiv(m, tm_), chid_p // tk_)
        out2d = pl.pallas_call(
            kernel,
            out_shape=jax.ShapeDtypeStruct((m, cout), out_dtype),
            grid_spec=pltpu.PrefetchScalarGridSpec(
                num_scalar_prefetch=0,
                grid=grid,
                in_specs=[
                    pl.BlockSpec((tm_, cin), lambda i, k: (i, 0)),
                    pl.BlockSpec((cin, tk_), lambda i, k: (0, k)),
                    pl.BlockSpec((1, tk_), lambda i, k: (0, k)),
                    pl.BlockSpec((tk_, cout), lambda i, k: (k, 0)),
                    pl.BlockSpec((1, cout), lambda i, k: (0, 0)),
                ],
                out_specs=pl.BlockSpec((tm_, cout), lambda i, k: (i, 0)),
                scratch_shapes=[pltpu.VMEM((tm_, cout), jnp.float32)],
            ),
            compiler_params=pltpu.CompilerParams(
                dimension_semantics=("parallel", "arbitrary"),
                vmem_limit_bytes=int(budget),
            ),
            cost_estimate=cost,
        )(x2d, w1p, b1p, w2p, b2c)

    return out2d.reshape(orig_shape[:-1] + (cout,))


def mlp_reference(x, w1, b1, w2, b2):
    """Pure-JAX reference mirroring the PyTorch forward (drop=0)."""
    h = jnp.einsum("...i,ij->...j", x, w1, precision=lax.Precision.HIGHEST) + b1
    h = 0.5 * h * (1.0 + lax.erf(h * _SQRT_HALF))
    return jnp.einsum("...i,ij->...j", h, w2, precision=lax.Precision.HIGHEST) + b2


if __name__ == "__main__":
    key = jax.random.PRNGKey(0)
    (kx, k1, kb1, k2, kb2, kx2, k3, k4, k5, k6,
     kx3, k7, k8, k9, k10) = jax.random.split(key, 15)

    # --- config 1: the module's toy config (in=16, hidden=32, out=16), f32 ---
    in_f, hid_f, out_f = 16, 32, 16
    x = jax.random.normal(kx, (2, 8, in_f), dtype=jnp.float32)
    w1 = jax.random.normal(k1, (in_f, hid_f), dtype=jnp.float32) * 0.05
    b1 = jax.random.normal(kb1, (hid_f,), dtype=jnp.float32) * 0.05
    w2 = jax.random.normal(k2, (hid_f, out_f), dtype=jnp.float32) * 0.05
    b2 = jax.random.normal(kb2, (out_f,), dtype=jnp.float32) * 0.05

    out = jax.block_until_ready(mlp_pallas(x, w1, b1, w2, b2))
    ref = mlp_reference(x, w1, b1, w2, b2)
    assert out.shape == (2, 8, out_f)
    assert jnp.allclose(out, ref, atol=1e-5, rtol=1e-5), "config1 (f32) mismatch"

    # --- config 2: non-128 channels + partial last token tile (m=80, tm=64) --
    x_b = jax.random.normal(kx2, (2, 4, 10, 48), dtype=jnp.float32)
    w1b = jax.random.normal(k3, (48, 96), dtype=jnp.float32) * 0.05
    b1b = jax.random.normal(k4, (96,), dtype=jnp.float32) * 0.05
    w2b = jax.random.normal(k5, (96, 48), dtype=jnp.float32) * 0.05
    b2b = jax.random.normal(k6, (48,), dtype=jnp.float32) * 0.05
    out_b = jax.block_until_ready(mlp_pallas(x_b, w1b, b1b, w2b, b2b, tm=64))
    ref_b = mlp_reference(x_b, w1b, b1b, w2b, b2b)
    assert out_b.shape == (2, 4, 10, 48)
    assert jnp.allclose(out_b, ref_b, atol=1e-4, rtol=1e-4), "config2 mismatch"

    # --- config 3: bf16 inputs (bf16 MXU operands, f32 accumulation) ---------
    x_c = x.astype(jnp.bfloat16)
    out_c = jax.block_until_ready(
        mlp_pallas(x_c, w1.astype(jnp.bfloat16), b1, w2.astype(jnp.bfloat16), b2))
    ref_c = mlp_reference(x_c.astype(jnp.float32), w1, b1, w2, b2)
    assert out_c.dtype == jnp.bfloat16
    assert jnp.allclose(out_c.astype(jnp.float32), ref_c, atol=5e-2, rtol=5e-2), \
        "config3 (bf16) mismatch"

    # --- config 4: forced hidden-axis tiling (multi-K accumulator path) ------
    x_d = jax.random.normal(kx3, (4, 24, 64), dtype=jnp.float32)
    w1d = jax.random.normal(k7, (64, 192), dtype=jnp.float32) * 0.05
    b1d = jax.random.normal(k8, (192,), dtype=jnp.float32) * 0.05
    w2d = jax.random.normal(k9, (192, 64), dtype=jnp.float32) * 0.05
    b2d = jax.random.normal(k10, (64,), dtype=jnp.float32) * 0.05
    out_d = jax.block_until_ready(mlp_pallas(x_d, w1d, b1d, w2d, b2d, tk=128))
    ref_d = mlp_reference(x_d, w1d, b1d, w2d, b2d)
    assert out_d.shape == (4, 24, 64)
    assert jnp.allclose(out_d, ref_d, atol=1e-4, rtol=1e-4), "config4 (multi-K) mismatch"

    # --- config 5: f32 inputs, bf16 MXU operands (exposed accuracy knob) -----
    out_e = jax.block_until_ready(
        mlp_pallas(x_b, w1b, b1b, w2b, b2b, compute_dtype=jnp.bfloat16))
    assert jnp.allclose(out_e, ref_b, atol=5e-2, rtol=5e-2), "config5 (bf16 MXU) mismatch"

    print("KERNEL_OK")
</pallas_src>

<mosaic_0001>
module attributes {stable_mosaic.version = 11 : i64} {
  func.func @kernel(%arg0: i32, %arg1: memref<16x16xf32, #tpu.memory_space<vmem>>, %arg2: memref<16x32xf32, #tpu.memory_space<vmem>>, %arg3: memref<1x32xf32, #tpu.memory_space<vmem>>, %arg4: memref<32x16xf32, #tpu.memory_space<vmem>>, %arg5: memref<1x16xf32, #tpu.memory_space<vmem>>, %arg6: memref<16x16xf32, #tpu.memory_space<vmem>>) attributes {dimension_semantics = [#tpu.dimension_semantics<parallel>], iteration_bounds = array<i64: 1>, scalar_prefetch = 0 : i64, scratch_operands = 0 : i64, tpu.core_type = #tpu.core_type<tc>, window_params = [{transform_indices = @transform_0, window_bounds = array<i64: 16, 16>}, {pipeline_mode = #tpu.pipeline_mode<synchronous>, transform_indices = @transform_1, window_bounds = array<i64: 16, 32>}, {pipeline_mode = #tpu.pipeline_mode<synchronous>, transform_indices = @transform_2, window_bounds = array<i64: 1, 32>}, {pipeline_mode = #tpu.pipeline_mode<synchronous>, transform_indices = @transform_3, window_bounds = array<i64: 32, 16>}, {pipeline_mode = #tpu.pipeline_mode<synchronous>, transform_indices = @transform_4, window_bounds = array<i64: 1, 16>}, {transform_indices = @transform_5, window_bounds = array<i64: 16, 16>}]} {
    %c0 = arith.constant 0 : index
    %c0_0 = arith.constant 0 : index
    %0 = vector.load %arg1[%c0, %c0_0] : memref<16x16xf32, #tpu.memory_space<vmem>>, vector<16x16xf32>
    %c0_1 = arith.constant 0 : index
    %c0_2 = arith.constant 0 : index
    %1 = vector.load %arg2[%c0_1, %c0_2] : memref<16x32xf32, #tpu.memory_space<vmem>>, vector<16x32xf32>
    %cst = arith.constant dense<0.000000e+00> : vector<16x32xf32>
    %2 = tpu.matmul %0, %1, %cst {dimension_numbers = #tpu.dot_dimension_numbers<[1], [0], [0], [1], [0, 0, 1, 1], [], []>} : vector<16x16xf32>, vector<16x32xf32>, vector<16x32xf32> -> vector<16x32xf32>
    %c0_3 = arith.constant 0 : index
    %c0_4 = arith.constant 0 : index
    %3 = vector.load %arg3[%c0_3, %c0_4] : memref<1x32xf32, #tpu.memory_space<vmem>>, vector<1x32xf32>
    %4 = vector.broadcast %3 : vector<1x32xf32> to vector<16x32xf32>
    %5 = arith.addf %2, %4 : vector<16x32xf32>
    %cst_5 = arith.constant 5.000000e-01 : f32
    %6 = vector.broadcast %cst_5 : f32 to vector<16x32xf32>
    %7 = arith.mulf %6, %5 : vector<16x32xf32>
    %cst_6 = arith.constant 0.707106769 : f32
    %8 = vector.broadcast %cst_6 : f32 to vector<16x32xf32>
    %9 = arith.mulf %5, %8 : vector<16x32xf32>
    %10 = math.erf %9 : vector<16x32xf32>
    %cst_7 = arith.constant 1.000000e+00 : f32
    %11 = vector.broadcast %cst_7 : f32 to vector<16x32xf32>
    %12 = arith.addf %11, %10 : vector<16x32xf32>
    %13 = arith.mulf %7, %12 : vector<16x32xf32>
    %c0_8 = arith.constant 0 : index
    %c0_9 = arith.constant 0 : index
    %14 = vector.load %arg4[%c0_8, %c0_9] : memref<32x16xf32, #tpu.memory_space<vmem>>, vector<32x16xf32>
    %cst_10 = arith.constant dense<0.000000e+00> : vector<16x16xf32>
    %15 = tpu.matmul %13, %14, %cst_10 {dimension_numbers = #tpu.dot_dimension_numbers<[1], [0], [0], [1], [0, 0, 1, 1], [], []>} : vector<16x32xf32>, vector<32x16xf32>, vector<16x16xf32> -> vector<16x16xf32>
    %c0_11 = arith.constant 0 : index
    %c0_12 = arith.constant 0 : index
    %16 = vector.load %arg5[%c0_11, %c0_12] : memref<1x16xf32, #tpu.memory_space<vmem>>, vector<1x16xf32>
    %17 = vector.broadcast %16 : vector<1x16xf32> to vector<16x16xf32>
    %18 = arith.addf %15, %17 : vector<16x16xf32>
    %c0_13 = arith.constant 0 : index
    %c0_14 = arith.constant 0 : index
    %19 = vector.load %arg6[%c0_13, %c0_14] : memref<16x16xf32, #tpu.memory_space<vmem>>, vector<16x16xf32>
    tpu.vector_store %arg6[%c0_13, %c0_14], %18 {strides = array<i32>} : memref<16x16xf32, #tpu.memory_space<vmem>>, vector<16x16xf32>,
    return
  }
  func.func @transform_0(%arg0: i32) -> (i32, i32) {
    %c0_i32 = arith.constant 0 : i32
    %c0_i32_0 = arith.constant 0 : i32
    return %arg0, %c0_i32 : i32, i32
  }
  func.func @transform_1(%arg0: i32) -> (i32, i32) {
    %c0_i32 = arith.constant 0 : i32
    %c0_i32_0 = arith.constant 0 : i32
    %c0_i32_1 = arith.constant 0 : i32
    return %c0_i32, %c0_i32_0 : i32, i32
  }
  func.func @transform_2(%arg0: i32) -> (i32, i32) {
    %c0_i32 = arith.constant 0 : i32
    %c0_i32_0 = arith.constant 0 : i32
    %c0_i32_1 = arith.constant 0 : i32
    return %c0_i32, %c0_i32_0 : i32, i32
  }
  func.func @transform_3(%arg0: i32) -> (i32, i32) {
    %c0_i32 = arith.constant 0 : i32
    %c0_i32_0 = arith.constant 0 : i32
    %c0_i32_1 = arith.constant 0 : i32
    return %c0_i32, %c0_i32_0 : i32, i32
  }
  func.func @transform_4(%arg0: i32) -> (i32, i32) {
    %c0_i32 = arith.constant 0 : i32
    %c0_i32_0 = arith.constant 0 : i32
    %c0_i32_1 = arith.constant 0 : i32
    return %c0_i32, %c0_i32_0 : i32, i32
  }
  func.func @transform_5(%arg0: i32) -> (i32, i32) {
    %c0_i32 = arith.constant 0 : i32
    %c0_i32_0 = arith.constant 0 : i32
    return %arg0, %c0_i32 : i32, i32
  }
}

module attributes {stable_mosaic.version = 11 : i64} {
  func.func @kernel(%arg0: i32, %arg1: memref<16x16xf32, #tpu.memory_space<vmem>>, %arg2: memref<16x32xf32, #tpu.memory_space<vmem>>, %arg3: memref<1x32xf32, #tpu.memory_space<vmem>>, %arg4: memref<32x16xf32, #tpu.memory_space<vmem>>, %arg5: memref<1x16xf32, #tpu.memory_space<vmem>>, %arg6: memref<16x16xf32, #tpu.memory_space<vmem>>) attributes {dimension_semantics = [#tpu.dimension_semantics<parallel>], iteration_bounds = array<i64: 1>, scalar_prefetch = 0 : i64, scratch_operands = 0 : i64, tpu.core_type = #tpu.core_type<tc>, window_params = [{transform_indices = @transform_0, window_bounds = array<i64: 16, 16>}, {pipeline_mode = #tpu.pipeline_mode<synchronous>, transform_indices = @transform_1, window_bounds = array<i64: 16, 32>}, {pipeline_mode = #tpu.pipeline_mode<synchronous>, transform_indices = @transform_2, window_bounds = array<i64: 1, 32>}, {pipeline_mode = #tpu.pipeline_mode<synchronous>, transform_indices = @transform_3, window_bounds = array<i64: 32, 16>}, {pipeline_mode = #tpu.pipeline_mode<synchronous>, transform_indices = @transform_4, window_bounds = array<i64: 1, 16>}, {transform_indices = @transform_5, window_bounds = array<i64: 16, 16>}]} {
    %c0 = arith.constant 0 : index
    %c0_0 = arith.constant 0 : index
    %0 = vector.load %arg1[%c0, %c0_0] : memref<16x16xf32, #tpu.memory_space<vmem>>, vector<16x16xf32>
    %c0_1 = arith.constant 0 : index
    %c0_2 = arith.constant 0 : index
    %1 = vector.load %arg2[%c0_1, %c0_2] : memref<16x32xf32, #tpu.memory_space<vmem>>, vector<16x32xf32>
    %cst = arith.constant dense<0.000000e+00> : vector<16x32xf32>
    %2 = tpu.matmul %0, %1, %cst {dimension_numbers = #tpu.dot_dimension_numbers<[1], [0], [0], [1], [0, 0, 1, 1], [], []>} : vector<16x16xf32>, vector<16x32xf32>, vector<16x32xf32> -> vector<16x32xf32>
    %c0_3 = arith.constant 0 : index
    %c0_4 = arith.constant 0 : index
    %3 = vector.load %arg3[%c0_3, %c0_4] : memref<1x32xf32, #tpu.memory_space<vmem>>, vector<1x32xf32>
    %4 = vector.broadcast %3 : vector<1x32xf32> to vector<16x32xf32>
    %5 = arith.addf %2, %4 : vector<16x32xf32>
    %cst_5 = arith.constant 5.000000e-01 : f32
    %6 = vector.broadcast %cst_5 : f32 to vector<16x32xf32>
    %7 = arith.mulf %6, %5 : vector<16x32xf32>
    %cst_6 = arith.constant 0.707106769 : f32
    %8 = vector.broadcast %cst_6 : f32 to vector<16x32xf32>
    %9 = arith.mulf %5, %8 : vector<16x32xf32>
    %10 = math.erf %9 : vector<16x32xf32>
    %cst_7 = arith.constant 1.000000e+00 : f32
    %11 = vector.broadcast %cst_7 : f32 to vector<16x32xf32>
    %12 = arith.addf %11, %10 : vector<16x32xf32>
    %13 = arith.mulf %7, %12 : vector<16x32xf32>
    %c0_8 = arith.constant 0 : index
    %c0_9 = arith.constant 0 : index
    %14 = vector.load %arg4[%c0_8, %c0_9] : memref<32x16xf32, #tpu.memory_space<vmem>>, vector<32x16xf32>
    %cst_10 = arith.constant dense<0.000000e+00> : vector<16x16xf32>
    %15 = tpu.matmul %13, %14, %cst_10 {dimension_numbers = #tpu.dot_dimension_numbers<[1], [0], [0], [1], [0, 0, 1, 1], [], []>} : vector<16x32xf32>, vector<32x16xf32>, vector<16x16xf32> -> vector<16x16xf32>
    %c0_11 = arith.constant 0 : index
    %c0_12 = arith.constant 0 : index
    %16 = vector.load %arg5[%c0_11, %c0_12] : memref<1x16xf32, #tpu.memory_space<vmem>>, vector<1x16xf32>
    %17 = vector.broadcast %16 : vector<1x16xf32> to vector<16x16xf32>
    %18 = arith.addf %15, %17 : vector<16x16xf32>
    %c0_13 = arith.constant 0 : index
    %c0_14 = arith.constant 0 : index
    %19 = vector.load %arg6[%c0_13, %c0_14] : memref<16x16xf32, #tpu.memory_space<vmem>>, vector<16x16xf32>
    tpu.vector_store %arg6[%c0_13, %c0_14], %18 {strides = array<i32>} : memref<16x16xf32, #tpu.memory_space<vmem>>, vector<16x16xf32>,
    return
  }
  func.func @transform_0(%arg0: i32) -> (i32, i32) {
    %c0_i32 = arith.constant 0 : i32
    %c0_i32_0 = arith.constant 0 : i32
    return %arg0, %c0_i32 : i32, i32
  }
  func.func @transform_1(%arg0: i32) -> (i32, i32) {
    %c0_i32 = arith.constant 0 : i32
    %c0_i32_0 = arith.constant 0 : i32
    %c0_i32_1 = arith.constant 0 : i32
    return %c0_i32, %c0_i32_0 : i32, i32
  }
  func.func @transform_2(%arg0: i32) -> (i32, i32) {
    %c0_i32 = arith.constant 0 : i32
    %c0_i32_0 = arith.constant 0 : i32
    %c0_i32_1 = arith.constant 0 : i32
    return %c0_i32, %c0_i32_0 : i32, i32
  }
  func.func @transform_3(%arg0: i32) -> (i32, i32) {
    %c0_i32 = arith.constant 0 : i32
    %c0_i32_0 = arith.constant 0 : i32
    %c0_i32_1 = arith.constant 0 : i32
    return %c0_i32, %c0_i32_0 : i32, i32
  }
  func.func @transform_4(%arg0: i32) -> (i32, i32) {
    %c0_i32 = arith.constant 0 : i32
    %c0_i32_0 = arith.constant 0 : i32
    %c0_i32_1 = arith.constant 0 : i32
    return %c0_i32, %c0_i32_0 : i32, i32
  }
  func.func @transform_5(%arg0: i32) -> (i32, i32) {
    %c0_i32 = arith.constant 0 : i32
    %c0_i32_0 = arith.constant 0 : i32
    return %arg0, %c0_i32 : i32, i32
  }
}

</mosaic_0001>

<llo_original>
// kernel: tpu_custom_call.1
$region0: #{tpu_custom_call.1}
  #allocation0 [shape = 'u32[]', space=smem, size = 0x4, offset = 0x4, fixed_abs, tag = 'smem constant byte address 0x4 - core index']
  #allocation1 [shape = 'u32[144,128]{1,0:T(1,128)}', space=vmem, size = 0x12000, scoped, tag = 'internal scratch']
  %s0 = inlined_call_operand.vmem [shape: f32[16,16], index: 0, kind: input, shape index: {}]
  %s1 = inlined_call_operand.vmem [shape: f32[16,32], index: 1, kind: input, shape index: {}]
  %s2 = inlined_call_operand.vmem [shape: f32[1,32], index: 2, kind: input, shape index: {}]
  %s3 = inlined_call_operand.vmem [shape: f32[32,16], index: 3, kind: input, shape index: {}]
  %s4 = inlined_call_operand.vmem [shape: f32[1,16], index: 4, kind: input, shape index: {}]
  %s5 = inlined_call_operand.hbm [shape: f32[16,16], index: 5, kind: output, shape index: {}]
  %s6 = sld [smem:[#allocation0]]
  $region30: #{tpu_custom_call.1} parent=0
    _
  %s8 = ssub.s32 1, %s6
  %s9 = scalar_select 0, %s8, %s6
  $region1: #{tpu_custom_call.1} parent=0
    #allocation2 [shape = 'u8[8192]{0}', space=vmem, size = 0x2000, scoped, tag = 'output window, operand 0, single buffered']
    #allocation3 [shape = 's32[1]{0}', space=sflag, size = 0x4, scoped, tag = 'scoped memory for tpu_custom_call.1']
    %10 = vsyncpa [#allocation3], 0
    // Predicated region
    $region2: #{tpu_custom_call.1} parent=1 // pred_check
      _
    $region3: #{tpu_custom_call.1} parent=1 // pred_check_branch
      %12 = sbr.rel (0) target = $region5
    $region4: #{tpu_custom_call.1} parent=1 // pred_region
      _
    $region5: #{tpu_custom_call.1} parent=1 // pred_fallthru
      _
    // Predicated region
    $region6: #{tpu_custom_call.1} parent=1 // pred_check
      _
    $region7: #{tpu_custom_call.1} parent=1 // pred_check_branch
      %14 = sbr.rel (0) target = $region9
    $region8: #{tpu_custom_call.1} parent=1 // pred_region
      _
    $region9: #{tpu_custom_call.1} parent=1 // pred_fallthru
      _
    // Predicated region
    $region10: #{tpu_custom_call.1} parent=1 // pred_check
      _
    $region11: #{tpu_custom_call.1} parent=1 // pred_check_branch
      %16 = sbr.rel (0) target = $region13
    $region12: #{tpu_custom_call.1} parent=1 // pred_region
      _
    $region13: #{tpu_custom_call.1} parent=1 // pred_fallthru
      _
    // Predicated region
    $region14: #{tpu_custom_call.1} parent=1 // pred_check
      _
    $region15: #{tpu_custom_call.1} parent=1 // pred_check_branch
      %18 = sbr.rel (0) target = $region17
    $region16: #{tpu_custom_call.1} parent=1 // pred_region
      _
    $region17: #{tpu_custom_call.1} parent=1 // pred_fallthru
      _
    // Predicated region
    $region18: #{tpu_custom_call.1} parent=1 // pred_check
      _
    $region19: #{tpu_custom_call.1} parent=1 // pred_check_branch
      %20 = sbr.rel (0) target = $region21
    $region20: #{tpu_custom_call.1} parent=1 // pred_region
      _
    $region21: #{tpu_custom_call.1} parent=1 // pred_fallthru
      _
    %v21 = vld [vmem:[%s0] sm:$0xff]
    %v22 = vld [vmem:[%s0 + $0x8] sm:$0xff]
    %v23 = vld [vmem:[%s1] sm:$0xff]
    %v24 = vld [vmem:[%s1 + $0x8] sm:$0xff]
    %v25 = vld [vmem:[%s2] sm:$0x1]
    %v27 = vlaneseq
    %v28 = vshrl.u32 %v27, 7
    %v29 = vsub.s32 0, %v28
    %v30 = vrot.slane %v25, %v29
    %vm32 = vcmask 130048
    %v34 = vsel %vm32, %v21, 0
    %v37 = vsel %vm32, %v22, 0
    %39 = vmatprep.subr.mxu0 0.0
    %40 = vmatpush1.msra.mxu0 %v23
    %41 = vmatprep.subr.mxu0 0.0
    %42 = vmatpush1.msra.mxu0 %v24
    %43 = vmatprep.subr.mxu0 0.0
    %44 = vmatpush1.msra.mxu0 0.0
    %45 = vmatprep.subr.mxu0 0.0
    %46 = vmatpush1.msra.mxu0 0.0
    %47 = vmatprep.subr.mxu0 0.0
    %48 = vmatpush1.msra.mxu0 0.0
    %49 = vmatprep.subr.mxu0 0.0
    %50 = vmatpush1.msra.mxu0 0.0
    %51 = vmatprep.subr.mxu0 0.0
    %52 = vmatpush1.msra.mxu0 0.0
    %53 = vmatprep.subr.mxu0 0.0
    %54 = vmatpush1.msra.mxu0 0.0
    %55 = vmatprep.subr.mxu0 0.0
    %56 = vmatpush1.msra.mxu0 0.0
    %57 = vmatprep.subr.mxu0 0.0
    %58 = vmatpush1.msra.mxu0 0.0
    %59 = vmatprep.subr.mxu0 0.0
    %60 = vmatpush1.msra.mxu0 0.0
    %61 = vmatprep.subr.mxu0 0.0
    %62 = vmatpush1.msra.mxu0 0.0
    %63 = vmatprep.subr.mxu0 0.0
    %64 = vmatpush1.msra.mxu0 0.0
    %65 = vmatprep.subr.mxu0 0.0
    %66 = vmatpush1.msra.mxu0 0.0
    %67 = vmatprep.subr.mxu0 0.0
    %68 = vmatpush1.msra.mxu0 0.0
    %69 = vmatprep.subr.mxu0 0.0
    %70 = vmatpush1.msra.mxu0 0.0
    %71 = vmatprep.subr.mxu0 0.0
    %72 = vmatpush1.msra.mxu0 0.0
    %73 = vmatprep.subr.mxu0 0.0
    %74 = vmatpush1.msra.mxu0 0.0
    %75 = vmatprep.subr.mxu0 0.0
    %76 = vmatpush1.msra.mxu0 0.0
    %77 = vmatprep.subr.mxu0 0.0
    %78 = vmatpush1.msra.mxu0 0.0
    %79 = vmatprep.subr.mxu0 0.0
    %80 = vmatpush1.msra.mxu0 0.0
    %81 = vmatprep.subr.mxu0 0.0
    %82 = vmatpush1.msra.mxu0 0.0
    %83 = vmatprep.subr.mxu0 0.0
    %84 = vmatpush1.msra.mxu0 0.0
    %85 = vmatprep.subr.mxu0 0.0
    %86 = vmatpush1.msra.mxu0 0.0
    %87 = vmatprep.subr.mxu0 0.0
    %88 = vmatpush1.msra.mxu0 0.0
    %89 = vmatprep.subr.mxu0 0.0
    %90 = vmatpush1.msra.mxu0 0.0
    %91 = vmatprep.subr.mxu0 0.0
    %92 = vmatpush1.msra.mxu0 0.0
    %93 = vmatprep.subr.mxu0 0.0
    %94 = vmatpush1.msra.mxu0 0.0
    %95 = vmatprep.subr.mxu0 0.0
    %96 = vmatpush1.msra.mxu0 0.0
    %97 = vmatprep.subr.mxu0 0.0
    %98 = vmatpush1.msra.mxu0 0.0
    %99 = vmatprep.subr.mxu0 0.0
    %100 = vmatpush1.msra.mxu0 0.0
    %101 = vmatprep.subr.mxu0 0.0
    %102 = vmatpush1.msra.mxu0 0.0
    %103 = vmatprep.mubr.f32.mxu0 0.0
    %104 = vmatmul.mubr.f32.gmra.mrb[0].mxu0 %v34
    %v105 = vpop.f32.mrb[0].mxu0
    %v106 = vadd.f32 %v30, %v105
    %v107 = vpop.f32.mrb[0].mxu0
    %108 = vmatprep.mubr.f32.mxu0 0.0
    %109 = vmatmul.mubr.f32.gmra.mrb[0].mxu0 %v37
    %v110 = vpop.f32.mrb[0].mxu0
    %v111 = vadd.f32 %v30, %v110
    %v112 = vpop.f32.mrb[0].mxu0
    %113 = vdwg.mxu0
    %v114 = vmul.f32 %v106, 0.5
    %v115 = vmul.f32 %v111, 0.5
    %v116 = vmul.f32 %v106, 0.70710677
    %v117 = vmul.f32 %v111, 0.70710677
    %v118 = verf.f32.pop %v116
    %v119 = verf.f32.pop %v117
    %v120 = vadd.f32 %v118, 1.0
    %v121 = vadd.f32 %v119, 1.0
    %v122 = vmul.f32 %v114, %v120
    %v123 = vmul.f32 %v115, %v121
    %v124 = vld [vmem:[%s3] sm:$0xff]
    %v125 = vld [vmem:[%s3 + $0x8] sm:$0xff]
    %v126 = vld [vmem:[%s3 + $0x10] sm:$0xff]
    %v127 = vld [vmem:[%s3 + $0x18] sm:$0xff]
    %v128 = vld [vmem:[%s4] sm:$0x1]
    %v130 = vlaneseq
    %v131 = vshrl.u32 %v130, 7
    %v132 = vsub.s32 0, %v131
    %v133 = vrot.slane %v128, %v132
    %vm135 = vcmask 261120
    %v137 = vsel %vm135, %v122, 0
    %v140 = vsel %vm135, %v123, 0
    %142 = vmatprep.subr.mxu0 0.0
    %143 = vmatpush1.msra.mxu0 %v124
    %144 = vmatprep.subr.mxu0 0.0
    %145 = vmatpush1.msra.mxu0 %v125
    %146 = vmatprep.subr.mxu0 0.0
    %147 = vmatpush1.msra.mxu0 %v126
    %148 = vmatprep.subr.mxu0 0.0
    %149 = vmatpush1.msra.mxu0 %v127
    %150 = vmatprep.subr.mxu0 0.0
    %151 = vmatpush1.msra.mxu0 0.0
    %152 = vmatprep.subr.mxu0 0.0
    %153 = vmatpush1.msra.mxu0 0.0
    %154 = vmatprep.subr.mxu0 0.0
    %155 = vmatpush1.msra.mxu0 0.0
    %156 = vmatprep.subr.mxu0 0.0
    %157 = vmatpush1.msra.mxu0 0.0
    %158 = vmatprep.subr.mxu0 0.0
    %159 = vmatpush1.msra.mxu0 0.0
    %160 = vmatprep.subr.mxu0 0.0
    %161 = vmatpush1.msra.mxu0 0.0
    %162 = vmatprep.subr.mxu0 0.0
    %163 = vmatpush1.msra.mxu0 0.0
    %164 = vmatprep.subr.mxu0 0.0
    %165 = vmatpush1.msra.mxu0 0.0
    %166 = vmatprep.subr.mxu0 0.0
    %167 = vmatpush1.msra.mxu0 0.0
    %168 = vmatprep.subr.mxu0 0.0
    %169 = vmatpush1.msra.mxu0 0.0
    %170 = vmatprep.subr.mxu0 0.0
    %171 = vmatpush1.msra.mxu0 0.0
    %172 = vmatprep.subr.mxu0 0.0
    %173 = vmatpush1.msra.mxu0 0.0
    %174 = vmatprep.subr.mxu0 0.0
    %175 = vmatpush1.msra.mxu0 0.0
    %176 = vmatprep.subr.mxu0 0.0
    %177 = vmatpush1.msra.mxu0 0.0
    %178 = vmatprep.subr.mxu0 0.0
    %179 = vmatpush1.msra.mxu0 0.0
    %180 = vmatprep.subr.mxu0 0.0
    %181 = vmatpush1.msra.mxu0 0.0
    %182 = vmatprep.subr.mxu0 0.0
    %183 = vmatpush1.msra.mxu0 0.0
    %184 = vmatprep.subr.mxu0 0.0
    %185 = vmatpush1.msra.mxu0 0.0
    %186 = vmatprep.subr.mxu0 0.0
    %187 = vmatpush1.msra.mxu0 0.0
    %188 = vmatprep.subr.mxu0 0.0
    %189 = vmatpush1.msra.mxu0 0.0
    %190 = vmatprep.subr.mxu0 0.0
    %191 = vmatpush1.msra.mxu0 0.0
    %192 = vmatprep.subr.mxu0 0.0
    %193 = vmatpush1.msra.mxu0 0.0
    %194 = vmatprep.subr.mxu0 0.0
    %195 = vmatpush1.msra.mxu0 0.0
    %196 = vmatprep.subr.mxu0 0.0
    %197 = vmatpush1.msra.mxu0 0.0
    %198 = vmatprep.subr.mxu0 0.0
    %199 = vmatpush1.msra.mxu0 0.0
    %200 = vmatprep.subr.mxu0 0.0
    %201 = vmatpush1.msra.mxu0 0.0
    %202 = vmatprep.subr.mxu0 0.0
    %203 = vmatpush1.msra.mxu0 0.0
    %204 = vmatprep.subr.mxu0 0.0
    %205 = vmatpush1.msra.mxu0 0.0
    %206 = vmatprep.mubr.f32.mxu0 0.0
    %207 = vmatmul.mubr.f32.gmra.mrb[0].mxu0 %v137
    %v208 = vpop.f32.mrb[0].mxu0
    %v209 = vadd.f32 %v133, %v208
    %v210 = vpop.f32.mrb[0].mxu0
    %211 = vmatprep.mubr.f32.mxu0 0.0
    %212 = vmatmul.mubr.f32.gmra.mrb[0].mxu0 %v140
    %v213 = vpop.f32.mrb[0].mxu0
    %v214 = vadd.f32 %v133, %v213
    %v215 = vpop.f32.mrb[0].mxu0
    %216 = vdwg.mxu0
    %217 = vst.msk [vmem:[#allocation2] sm:$0xff] %vm32, %v209
    %218 = vst.msk [vmem:[#allocation2 + $0x8] sm:$0xff] %vm32, %v214
    // Predicated region
    $region22: #{tpu_custom_call.1} parent=1 // pred_check
      _
    $region23: #{tpu_custom_call.1} parent=1 // pred_check_branch
      %220 = sbr.rel (0) target = $region25
    $region24: #{tpu_custom_call.1} parent=1 // pred_region
      %s222 = ssub.s32 256, 256
      %223 = vsyncadd [#allocation3], %s222
      %s224 = sshll.u32 [#allocation2], 4
      %s225 = int_to_ptr.vmem [resolvable:$true] %s224
      %230 = dma.vmem_to_hbm [thread:$0]  %s225, 256, %s5, [#allocation3], 128, 128, 8
    $region25: #{tpu_custom_call.1} parent=1 // pred_fallthru
      _
    // Predicated region
    $region26: #{tpu_custom_call.1} parent=1 // pred_check
      _
    $region27: #{tpu_custom_call.1} parent=1 // pred_check_branch
      %232 = sbr.rel (0) target = $region29
    $region28: #{tpu_custom_call.1} parent=1 // pred_region
      %233 = dma.done [#allocation3], 256
    $region29: #{tpu_custom_call.1} parent=1 // pred_fallthru
      _
    %234 = vsyncpa [#allocation3], 1

// kernel: tpu_custom_call.1
$region0: #{tpu_custom_call.1}
  #allocation0 [shape = 'u32[]', space=smem, size = 0x4, offset = 0x4, fixed_abs, tag = 'smem constant byte address 0x4 - core index']
  #allocation1 [shape = 'u32[144,128]{1,0:T(1,128)}', space=vmem, size = 0x12000, scoped, tag = 'internal scratch']
  %s0 = inlined_call_operand.vmem [shape: f32[16,16], index: 0, kind: input, shape index: {}]
  %s1 = inlined_call_operand.vmem [shape: f32[16,32], index: 1, kind: input, shape index: {}]
  %s2 = inlined_call_operand.vmem [shape: f32[1,32], index: 2, kind: input, shape index: {}]
  %s3 = inlined_call_operand.vmem [shape: f32[32,16], index: 3, kind: input, shape index: {}]
  %s4 = inlined_call_operand.vmem [shape: f32[1,16], index: 4, kind: input, shape index: {}]
  %s5 = inlined_call_operand.hbm [shape: f32[16,16], index: 5, kind: output, shape index: {}]
  %s6 = sld [smem:[#allocation0]]
  $region30: #{tpu_custom_call.1} parent=0
    _
  %s8 = ssub.s32 1, %s6
  %s9 = scalar_select 0, %s8, %s6
  $region1: #{tpu_custom_call.1} parent=0
    #allocation2 [shape = 'u8[8192]{0}', space=vmem, size = 0x2000, scoped, tag = 'output window, operand 0, single buffered']
    #allocation3 [shape = 's32[1]{0}', space=sflag, size = 0x4, scoped, tag = 'scoped memory for tpu_custom_call.1']
    %10 = vsyncpa [#allocation3], 0
    // Predicated region
    $region2: #{tpu_custom_call.1} parent=1 // pred_check
      _
    $region3: #{tpu_custom_call.1} parent=1 // pred_check_branch
      %12 = sbr.rel (0) target = $region5
    $region4: #{tpu_custom_call.1} parent=1 // pred_region
      _
    $region5: #{tpu_custom_call.1} parent=1 // pred_fallthru
      _
    // Predicated region
    $region6: #{tpu_custom_call.1} parent=1 // pred_check
      _
    $region7: #{tpu_custom_call.1} parent=1 // pred_check_branch
      %14 = sbr.rel (0) target = $region9
    $region8: #{tpu_custom_call.1} parent=1 // pred_region
      _
    $region9: #{tpu_custom_call.1} parent=1 // pred_fallthru
      _
    // Predicated region
    $region10: #{tpu_custom_call.1} parent=1 // pred_check
      _
    $region11: #{tpu_custom_call.1} parent=1 // pred_check_branch
      %16 = sbr.rel (0) target = $region13
    $region12: #{tpu_custom_call.1} parent=1 // pred_region
      _
    $region13: #{tpu_custom_call.1} parent=1 // pred_fallthru
      _
    // Predicated region
    $region14: #{tpu_custom_call.1} parent=1 // pred_check
      _
    $region15: #{tpu_custom_call.1} parent=1 // pred_check_branch
      %18 = sbr.rel (0) target = $region17
    $region16: #{tpu_custom_call.1} parent=1 // pred_region
      _
    $region17: #{tpu_custom_call.1} parent=1 // pred_fallthru
      _
    // Predicated region
    $region18: #{tpu_custom_call.1} parent=1 // pred_check
      _
    $region19: #{tpu_custom_call.1} parent=1 // pred_check_branch
      %20 = sbr.rel (0) target = $region21
    $region20: #{tpu_custom_call.1} parent=1 // pred_region
      _
    $region21: #{tpu_custom_call.1} parent=1 // pred_fallthru
      _
    %v21 = vld [vmem:[%s0] sm:$0xff]
    %v22 = vld [vmem:[%s0 + $0x8] sm:$0xff]
    %v23 = vld [vmem:[%s1] sm:$0xff]
    %v24 = vld [vmem:[%s1 + $0x8] sm:$0xff]
    %v25 = vld [vmem:[%s2] sm:$0x1]
    %v27 = vlaneseq
    %v28 = vshrl.u32 %v27, 7
    %v29 = vsub.s32 0, %v28
    %v30 = vrot.slane %v25, %v29
    %vm32 = vcmask 130048
    %v34 = vsel %vm32, %v21, 0
    %v37 = vsel %vm32, %v22, 0
    %39 = vmatprep.subr.mxu0 0.0
    %40 = vmatpush1.msra.mxu0 %v23
    %41 = vmatprep.subr.mxu0 0.0
    %42 = vmatpush1.msra.mxu0 %v24
    %43 = vmatprep.subr.mxu0 0.0
    %44 = vmatpush1.msra.mxu0 0.0
    %45 = vmatprep.subr.mxu0 0.0
    %46 = vmatpush1.msra.mxu0 0.0
    %47 = vmatprep.subr.mxu0 0.0
    %48 = vmatpush1.msra.mxu0 0.0
    %49 = vmatprep.subr.mxu0 0.0
    %50 = vmatpush1.msra.mxu0 0.0
    %51 = vmatprep.subr.mxu0 0.0
    %52 = vmatpush1.msra.mxu0 0.0
    %53 = vmatprep.subr.mxu0 0.0
    %54 = vmatpush1.msra.mxu0 0.0
    %55 = vmatprep.subr.mxu0 0.0
    %56 = vmatpush1.msra.mxu0 0.0
    %57 = vmatprep.subr.mxu0 0.0
    %58 = vmatpush1.msra.mxu0 0.0
    %59 = vmatprep.subr.mxu0 0.0
    %60 = vmatpush1.msra.mxu0 0.0
    %61 = vmatprep.subr.mxu0 0.0
    %62 = vmatpush1.msra.mxu0 0.0
    %63 = vmatprep.subr.mxu0 0.0
    %64 = vmatpush1.msra.mxu0 0.0
    %65 = vmatprep.subr.mxu0 0.0
    %66 = vmatpush1.msra.mxu0 0.0
    %67 = vmatprep.subr.mxu0 0.0
    %68 = vmatpush1.msra.mxu0 0.0
    %69 = vmatprep.subr.mxu0 0.0
    %70 = vmatpush1.msra.mxu0 0.0
    %71 = vmatprep.subr.mxu0 0.0
    %72 = vmatpush1.msra.mxu0 0.0
    %73 = vmatprep.subr.mxu0 0.0
    %74 = vmatpush1.msra.mxu0 0.0
    %75 = vmatprep.subr.mxu0 0.0
    %76 = vmatpush1.msra.mxu0 0.0
    %77 = vmatprep.subr.mxu0 0.0
    %78 = vmatpush1.msra.mxu0 0.0
    %79 = vmatprep.subr.mxu0 0.0
    %80 = vmatpush1.msra.mxu0 0.0
    %81 = vmatprep.subr.mxu0 0.0
    %82 = vmatpush1.msra.mxu0 0.0
    %83 = vmatprep.subr.mxu0 0.0
    %84 = vmatpush1.msra.mxu0 0.0
    %85 = vmatprep.subr.mxu0 0.0
    %86 = vmatpush1.msra.mxu0 0.0
    %87 = vmatprep.subr.mxu0 0.0
    %88 = vmatpush1.msra.mxu0 0.0
    %89 = vmatprep.subr.mxu0 0.0
    %90 = vmatpush1.msra.mxu0 0.0
    %91 = vmatprep.subr.mxu0 0.0
    %92 = vmatpush1.msra.mxu0 0.0
    %93 = vmatprep.subr.mxu0 0.0
    %94 = vmatpush1.msra.mxu0 0.0
    %95 = vmatprep.subr.mxu0 0.0
    %96 = vmatpush1.msra.mxu0 0.0
    %97 = vmatprep.subr.mxu0 0.0
    %98 = vmatpush1.msra.mxu0 0.0
    %99 = vmatprep.subr.mxu0 0.0
    %100 = vmatpush1.msra.mxu0 0.0
    %101 = vmatprep.subr.mxu0 0.0
    %102 = vmatpush1.msra.mxu0 0.0
    %103 = vmatprep.mubr.f32.mxu0 0.0
    %104 = vmatmul.mubr.f32.gmra.mrb[0].mxu0 %v34
    %v105 = vpop.f32.mrb[0].mxu0
    %v106 = vadd.f32 %v30, %v105
    %v107 = vpop.f32.mrb[0].mxu0
    %108 = vmatprep.mubr.f32.mxu0 0.0
    %109 = vmatmul.mubr.f32.gmra.mrb[0].mxu0 %v37
    %v110 = vpop.f32.mrb[0].mxu0
    %v111 = vadd.f32 %v30, %v110
    %v112 = vpop.f32.mrb[0].mxu0
    %113 = vdwg.mxu0
    %v114 = vmul.f32 %v106, 0.5
    %v115 = vmul.f32 %v111, 0.5
    %v116 = vmul.f32 %v106, 0.70710677
    %v117 = vmul.f32 %v111, 0.70710677
    %v118 = verf.f32.pop %v116
    %v119 = verf.f32.pop %v117
    %v120 = vadd.f32 %v118, 1.0
    %v121 = vadd.f32 %v119, 1.0
    %v122 = vmul.f32 %v114, %v120
    %v123 = vmul.f32 %v115, %v121
    %v124 = vld [vmem:[%s3] sm:$0xff]
    %v125 = vld [vmem:[%s3 + $0x8] sm:$0xff]
    %v126 = vld [vmem:[%s3 + $0x10] sm:$0xff]
    %v127 = vld [vmem:[%s3 + $0x18] sm:$0xff]
    %v128 = vld [vmem:[%s4] sm:$0x1]
    %v130 = vlaneseq
    %v131 = vshrl.u32 %v130, 7
    %v132 = vsub.s32 0, %v131
    %v133 = vrot.slane %v128, %v132
    %vm135 = vcmask 261120
    %v137 = vsel %vm135, %v122, 0
    %v140 = vsel %vm135, %v123, 0
    %142 = vmatprep.subr.mxu0 0.0
    %143 = vmatpush1.msra.mxu0 %v124
    %144 = vmatprep.subr.mxu0 0.0
    %145 = vmatpush1.msra.mxu0 %v125
    %146 = vmatprep.subr.mxu0 0.0
    %147 = vmatpush1.msra.mxu0 %v126
    %148 = vmatprep.subr.mxu0 0.0
    %149 = vmatpush1.msra.mxu0 %v127
    %150 = vmatprep.subr.mxu0 0.0
    %151 = vmatpush1.msra.mxu0 0.0
    %152 = vmatprep.subr.mxu0 0.0
    %153 = vmatpush1.msra.mxu0 0.0
    %154 = vmatprep.subr.mxu0 0.0
    %155 = vmatpush1.msra.mxu0 0.0
    %156 = vmatprep.subr.mxu0 0.0
    %157 = vmatpush1.msra.mxu0 0.0
    %158 = vmatprep.subr.mxu0 0.0
    %159 = vmatpush1.msra.mxu0 0.0
    %160 = vmatprep.subr.mxu0 0.0
    %161 = vmatpush1.msra.mxu0 0.0
    %162 = vmatprep.subr.mxu0 0.0
    %163 = vmatpush1.msra.mxu0 0.0
    %164 = vmatprep.subr.mxu0 0.0
    %165 = vmatpush1.msra.mxu0 0.0
    %166 = vmatprep.subr.mxu0 0.0
    %167 = vmatpush1.msra.mxu0 0.0
    %168 = vmatprep.subr.mxu0 0.0
    %169 = vmatpush1.msra.mxu0 0.0
    %170 = vmatprep.subr.mxu0 0.0
    %171 = vmatpush1.msra.mxu0 0.0
    %172 = vmatprep.subr.mxu0 0.0
    %173 = vmatpush1.msra.mxu0 0.0
    %174 = vmatprep.subr.mxu0 0.0
    %175 = vmatpush1.msra.mxu0 0.0
    %176 = vmatprep.subr.mxu0 0.0
    %177 = vmatpush1.msra.mxu0 0.0
    %178 = vmatprep.subr.mxu0 0.0
    %179 = vmatpush1.msra.mxu0 0.0
    %180 = vmatprep.subr.mxu0 0.0
    %181 = vmatpush1.msra.mxu0 0.0
    %182 = vmatprep.subr.mxu0 0.0
    %183 = vmatpush1.msra.mxu0 0.0
    %184 = vmatprep.subr.mxu0 0.0
    %185 = vmatpush1.msra.mxu0 0.0
    %186 = vmatprep.subr.mxu0 0.0
    %187 = vmatpush1.msra.mxu0 0.0
    %188 = vmatprep.subr.mxu0 0.0
    %189 = vmatpush1.msra.mxu0 0.0
    %190 = vmatprep.subr.mxu0 0.0
    %191 = vmatpush1.msra.mxu0 0.0
    %192 = vmatprep.subr.mxu0 0.0
    %193 = vmatpush1.msra.mxu0 0.0
    %194 = vmatprep.subr.mxu0 0.0
    %195 = vmatpush1.msra.mxu0 0.0
    %196 = vmatprep.subr.mxu0 0.0
    %197 = vmatpush1.msra.mxu0 0.0
    %198 = vmatprep.subr.mxu0 0.0
    %199 = vmatpush1.msra.mxu0 0.0
    %200 = vmatprep.subr.mxu0 0.0
    %201 = vmatpush1.msra.mxu0 0.0
    %202 = vmatprep.subr.mxu0 0.0
    %203 = vmatpush1.msra.mxu0 0.0
    %204 = vmatprep.subr.mxu0 0.0
    %205 = vmatpush1.msra.mxu0 0.0
    %206 = vmatprep.mubr.f32.mxu0 0.0
    %207 = vmatmul.mubr.f32.gmra.mrb[0].mxu0 %v137
    %v208 = vpop.f32.mrb[0].mxu0
    %v209 = vadd.f32 %v133, %v208
    %v210 = vpop.f32.mrb[0].mxu0
    %211 = vmatprep.mubr.f32.mxu0 0.0
    %212 = vmatmul.mubr.f32.gmra.mrb[0].mxu0 %v140
    %v213 = vpop.f32.mrb[0].mxu0
    %v214 = vadd.f32 %v133, %v213
    %v215 = vpop.f32.mrb[0].mxu0
    %216 = vdwg.mxu0
    %217 = vst.msk [vmem:[#allocation2] sm:$0xff] %vm32, %v209
    %218 = vst.msk [vmem:[#allocation2 + $0x8] sm:$0xff] %vm32, %v214
    // Predicated region
    $region22: #{tpu_custom_call.1} parent=1 // pred_check
      _
    $region23: #{tpu_custom_call.1} parent=1 // pred_check_branch
      %220 = sbr.rel (0) target = $region25
    $region24: #{tpu_custom_call.1} parent=1 // pred_region
      %s222 = ssub.s32 256, 256
      %223 = vsyncadd [#allocation3], %s222
      %s224 = sshll.u32 [#allocation2], 4
      %s225 = int_to_ptr.vmem [resolvable:$true] %s224
      %230 = dma.vmem_to_hbm [thread:$0]  %s225, 256, %s5, [#allocation3], 128, 128, 8
    $region25: #{tpu_custom_call.1} parent=1 // pred_fallthru
      _
    // Predicated region
    $region26: #{tpu_custom_call.1} parent=1 // pred_check
      _
    $region27: #{tpu_custom_call.1} parent=1 // pred_check_branch
      %232 = sbr.rel (0) target = $region29
    $region28: #{tpu_custom_call.1} parent=1 // pred_region
      %233 = dma.done [#allocation3], 256
    $region29: #{tpu_custom_call.1} parent=1 // pred_fallthru
      _
    %234 = vsyncpa [#allocation3], 1

</llo_original>
